<compile_context>
chip_gen: v6e
topology: v6e:2x2x1
jax: 0.10.0
libtpu: 0.0.40
codegen_flags: <defaults>
</compile_context>

<pallas_src>
import functools

import jax
import jax.numpy as jnp
from jax.experimental import pallas as pl
from jax.experimental.pallas import tpu as pltpu


def _round_up(x, m):
    return (x + m - 1) // m * m


def _mlp_kernel(xt_ref, w1t_ref, w2t_ref, b2t_ref, w3t_ref, b3_ref, o_ref):
    # Transposed layout: batch lives on the lane (minor) dimension.
    # xt is already bf16 and carries a trailing ones row, so fc1's bias is just
    # an extra MXU contraction column (no VPU bias pass over the big h1 tile).
    h1 = jnp.dot(w1t_ref[...], xt_ref[...],
                 preferred_element_type=jnp.float32)                 # (h_pad, TB) f32
    h1b = jnp.maximum(h1, 0.0).astype(jnp.bfloat16)                  # relu + cast for fc2

    h2 = jnp.dot(w2t_ref[...], h1b,
                 preferred_element_type=jnp.float32)                 # (n_pad, TB) f32
    h2 = jnp.maximum(h2 + b2t_ref[...], 0.0)                         # bias + relu (small tile)

    # fc3 (out_features == 1): VPU multiply + XLU sublane reduce -> lane-dense (1, TB).
    y = jnp.sum(h2 * w3t_ref[...], axis=0, keepdims=True) + b3_ref[0, 0]
    o_ref[...] = y                                                   # unmasked full-lane stores


@functools.partial(jax.jit, static_argnames=("block_rows",))
def simple_forward(x, w1, b1, w2, b2, w3, b3, block_rows=16384):
    """Pallas equivalent of Simple.forward(x, _).

    Weights are stored (in_features, out_features); y = x @ W + b matches
    PyTorch's x @ W.T + b.  All packing below is shape-static, runs as one fused
    jit region, and in production would be done once offline.
    """
    batch, n_shifts = x.shape
    hidden = w1.shape[1]
    k1 = n_shifts + 1                        # fc1 contraction dim (+1: folded bias)

    h_pad = _round_up(hidden, 16)            # hidden: 100 -> 112 (bf16 sublane packing)
    n_pad = _round_up(n_shifts, 8)           # fc2/fc3 feature dim: 10 -> 16

    # Batch tile: lane-dense (multiple of 128), large to amortize the ~0.35us
    # per-grid-step overhead.  Capped at block_rows (default 16384 keeps the f32
    # intermediates ~12 MiB — safe inside v7x's 64 MiB/TC VMEM; on v5e/v6e one
    # may pass block_rows=32768) and at ceil(batch/2) so there are >=2 tiles for
    # the "parallel" axis (both v7x TensorCores get work).
    half_batch = max(128, _round_up((batch + 1) // 2, 128))
    tb = max(128, min(_round_up(block_rows, 128), half_batch))
    batch_pad = _round_up(batch, tb)
    ntiles = batch_pad // tb

    # ---- host-side packing (exact: zero-padded weights / biases) ----
    # pad + transpose + bf16 cast + ones-row augment in one fused expression:
    # the streamed operand is 2*(n_shifts+1) bytes/row instead of 4*n_shifts.
    # TODO(synk): ideally the producer emits x already as (n_shifts, batch) bf16
    # so this transposed copy disappears entirely.
    xt = jnp.pad(x, ((0, batch_pad - batch), (0, 0))).T.astype(jnp.bfloat16)     # (n_shifts, batch_pad)
    xt = jnp.concatenate([xt, jnp.ones((1, batch_pad), jnp.bfloat16)], axis=0)   # (k1, batch_pad)

    # fc1 weight with bias folded in as an extra contraction column (K: 10 -> 11).
    w1t = jnp.concatenate([w1.T, b1.reshape(-1, 1)], axis=1)                     # (hidden, k1)
    w1t = jnp.pad(w1t, ((0, h_pad - hidden), (0, 0))).astype(jnp.bfloat16)       # (h_pad, k1) bf16
    w2t = jnp.pad(w2.T, ((0, n_pad - n_shifts),
                         (0, h_pad - hidden))).astype(jnp.bfloat16)              # (n_pad, h_pad) bf16
    b2t = jnp.pad(b2.reshape(-1), (0, n_pad - n_shifts)).reshape(n_pad, 1)       # f32 column
    w3t = jnp.pad(w3.reshape(-1), (0, n_pad - n_shifts)).reshape(n_pad, 1)       # f32 column
    b3s = b3.reshape(1, 1).astype(jnp.float32)                                   # SMEM scalar

    const2 = lambda i: (0, 0)   # weights stay VMEM-resident across the batch grid

    out = pl.pallas_call(
        _mlp_kernel,
        out_shape=jax.ShapeDtypeStruct((ntiles, 1, tb), jnp.float32),
        grid=(ntiles,),
        in_specs=[
            pl.BlockSpec((k1, tb), lambda i: (0, i)),              # x tiles (bf16, double-buffered)
            pl.BlockSpec((h_pad, k1), const2),                     # w1.T | b1 (resident)
            pl.BlockSpec((n_pad, h_pad), const2),                  # w2.T
            pl.BlockSpec((n_pad, 1), const2),                      # b2
            pl.BlockSpec((n_pad, 1), const2),                      # w3
            pl.BlockSpec(memory_space=pltpu.MemorySpace.SMEM),     # b3 scalar
        ],
        out_specs=pl.BlockSpec((None, 1, tb), lambda i: (i, 0, 0)),  # lane-dense output rows
        compiler_params=pltpu.CompilerParams(
            dimension_semantics=("parallel",),          # v7x: both TCs split the batch tiles
            vmem_limit_bytes=48 * 1024 * 1024,          # headroom for block_rows up to 32768 on v5e/v6e
        ),
    )(xt, w1t, w2t, b2t, w3t, b3s)

    y = out.reshape(batch_pad)[:batch]
    # PyTorch `.squeeze()` drops all size-1 dims (batch==1 -> scalar).
    return jnp.squeeze(y)


def init_params(key, n_shifts):
    """Deterministic synthetic parameters matching nn.Linear shapes,
    stored as (in_features, out_features) + flat biases."""
    hidden = 10 * n_shifts
    k1, k2, k3, k4, k5, k6 = jax.random.split(key, 6)

    def lin(kw, kb, fan_in, fan_out):
        bound = 1.0 / jnp.sqrt(jnp.float32(fan_in))
        w = jax.random.uniform(kw, (fan_in, fan_out), jnp.float32, -bound, bound)
        b = jax.random.uniform(kb, (fan_out,), jnp.float32, -bound, bound)
        return w, b

    w1, b1 = lin(k1, k2, n_shifts, hidden)
    w2, b2 = lin(k3, k4, hidden, n_shifts)
    w3, b3 = lin(k5, k6, n_shifts, 1)
    return w1, b1, w2, b2, w3, b3


def _reference_bf16(x, w1, b1, w2, b2, w3, b3):
    # Mirrors the kernel's precision: bf16 MXU inputs (fc1 bias folded into the
    # contraction in bf16), f32 accumulation and elementwise.
    xa = jnp.concatenate([x, jnp.ones((x.shape[0], 1), x.dtype)], axis=1).astype(jnp.bfloat16)
    w1a = jnp.concatenate([w1, b1.reshape(1, -1)], axis=0).astype(jnp.bfloat16)
    h1 = jnp.maximum(jnp.dot(xa, w1a, preferred_element_type=jnp.float32), 0.0)
    h2 = jnp.dot(h1.astype(jnp.bfloat16), w2.astype(jnp.bfloat16),
                 preferred_element_type=jnp.float32) + b2
    h2 = jnp.maximum(h2, 0.0)
    y = jnp.dot(h2, w3, preferred_element_type=jnp.float32)[:, 0] + b3[0]
    return jnp.squeeze(y)


def _reference_f32(x, w1, b1, w2, b2, w3, b3):
    # True f32 nn.Linear math (kernel intentionally trades this for bf16 MXU inputs).
    h1 = jnp.maximum(x @ w1 + b1, 0.0)
    h2 = jnp.maximum(h1 @ w2 + b2, 0.0)
    return jnp.squeeze(h2 @ w3 + b3)


if __name__ == "__main__":
    n_shifts = 10   # SimpleParams default
    key = jax.random.PRNGKey(0)
    kx, kx2, kp = jax.random.split(key, 3)
    params = init_params(kp, n_shifts)

    # Small shipped-config shape (single 128-row tile).
    batch = 8
    x = jax.random.normal(kx, (batch, n_shifts), dtype=jnp.float32)
    y = simple_forward(x, *params)
    jax.block_until_ready(y)
    assert y.shape == (batch,)
    assert jnp.allclose(y, _reference_bf16(x, *params), atol=2e-3, rtol=2e-3)
    assert jnp.allclose(y, _reference_f32(x, *params), atol=5e-2, rtol=5e-2)

    # Multi-tile grid path (ragged batch, forced 3 tiles of 128 rows).
    batch2 = 300
    x2 = jax.random.normal(kx2, (batch2, n_shifts), dtype=jnp.float32)
    y2 = simple_forward(x2, *params, block_rows=128)
    jax.block_until_ready(y2)
    assert y2.shape == (batch2,)
    assert jnp.allclose(y2, _reference_bf16(x2, *params), atol=2e-3, rtol=2e-3)

    # Default tiling: half-batch cap -> 2 "parallel" tiles (megacore path).
    y3 = simple_forward(x2, *params)
    jax.block_until_ready(y3)
    assert y3.shape == (batch2,)
    assert jnp.allclose(y3, y2, atol=1e-5, rtol=1e-5)

    print("KERNEL_OK")
</pallas_src>

<mosaic_0001>
module attributes {stable_mosaic.version = 11 : i64} {
  func.func @_mlp_kernel(%arg0: i32, %arg1: memref<11x128xbf16, #tpu.memory_space<vmem>>, %arg2: memref<112x11xbf16, #tpu.memory_space<vmem>>, %arg3: memref<16x112xbf16, #tpu.memory_space<vmem>>, %arg4: memref<16x1xf32, #tpu.memory_space<vmem>>, %arg5: memref<16x1xf32, #tpu.memory_space<vmem>>, %arg6: memref<1x1xf32, #tpu.memory_space<smem>>, %arg7: memref<1x1x128xf32, #tpu.memory_space<vmem>>) attributes {dimension_semantics = [#tpu.dimension_semantics<parallel>], iteration_bounds = array<i64: 1>, scalar_prefetch = 0 : i64, scratch_operands = 0 : i64, tpu.core_type = #tpu.core_type<tc>, window_params = [{transform_indices = @transform_0, window_bounds = array<i64: 11, 128>}, {pipeline_mode = #tpu.pipeline_mode<synchronous>, transform_indices = @transform_1, window_bounds = array<i64: 112, 11>}, {pipeline_mode = #tpu.pipeline_mode<synchronous>, transform_indices = @transform_2, window_bounds = array<i64: 16, 112>}, {pipeline_mode = #tpu.pipeline_mode<synchronous>, transform_indices = @transform_3, window_bounds = array<i64: 16, 1>}, {pipeline_mode = #tpu.pipeline_mode<synchronous>, transform_indices = @transform_4, window_bounds = array<i64: 16, 1>}, {transform_indices = @transform_5, window_bounds = array<i64: 1, 1>}, {transform_indices = @transform_6, window_bounds = array<i64: 1, 1, 128>}]} {
    %c0 = arith.constant 0 : index
    %c0_0 = arith.constant 0 : index
    %0 = vector.load %arg2[%c0, %c0_0] : memref<112x11xbf16, #tpu.memory_space<vmem>>, vector<112x11xbf16>
    %c0_1 = arith.constant 0 : index
    %c0_2 = arith.constant 0 : index
    %1 = vector.load %arg1[%c0_1, %c0_2] : memref<11x128xbf16, #tpu.memory_space<vmem>>, vector<11x128xbf16>
    %cst = arith.constant dense<0.000000e+00> : vector<112x128xf32>
    %2 = tpu.matmul %0, %1, %cst {dimension_numbers = #tpu.dot_dimension_numbers<[1], [0], [0], [1], [0, 0, 1, 1], [], []>} : vector<112x11xbf16>, vector<11x128xbf16>, vector<112x128xf32> -> vector<112x128xf32>
    %cst_3 = arith.constant 0.000000e+00 : f32
    %3 = vector.broadcast %cst_3 : f32 to vector<112x128xf32>
    %4 = arith.maximumf %2, %3 : vector<112x128xf32>
    %5 = arith.truncf %4 : vector<112x128xf32> to vector<112x128xbf16>
    %c0_4 = arith.constant 0 : index
    %c0_5 = arith.constant 0 : index
    %6 = vector.load %arg3[%c0_4, %c0_5] : memref<16x112xbf16, #tpu.memory_space<vmem>>, vector<16x112xbf16>
    %cst_6 = arith.constant dense<0.000000e+00> : vector<16x128xf32>
    %7 = tpu.matmul %6, %5, %cst_6 {dimension_numbers = #tpu.dot_dimension_numbers<[1], [0], [0], [1], [0, 0, 1, 1], [], []>} : vector<16x112xbf16>, vector<112x128xbf16>, vector<16x128xf32> -> vector<16x128xf32>
    %c0_7 = arith.constant 0 : index
    %c0_8 = arith.constant 0 : index
    %8 = vector.load %arg4[%c0_7, %c0_8] : memref<16x1xf32, #tpu.memory_space<vmem>>, vector<16x1xf32>
    %9 = vector.broadcast %8 : vector<16x1xf32> to vector<16x128xf32>
    %10 = arith.addf %7, %9 : vector<16x128xf32>
    %cst_9 = arith.constant 0.000000e+00 : f32
    %11 = vector.broadcast %cst_9 : f32 to vector<16x128xf32>
    %12 = arith.maximumf %10, %11 : vector<16x128xf32>
    %c0_10 = arith.constant 0 : index
    %c0_11 = arith.constant 0 : index
    %13 = vector.load %arg5[%c0_10, %c0_11] : memref<16x1xf32, #tpu.memory_space<vmem>>, vector<16x1xf32>
    %14 = vector.broadcast %13 : vector<16x1xf32> to vector<16x128xf32>
    %15 = arith.mulf %12, %14 : vector<16x128xf32>
    %cst_12 = arith.constant dense<0.000000e+00> : vector<128xf32>
    %16 = vector.multi_reduction <add>, %15, %cst_12 [0] : vector<16x128xf32> to vector<128xf32>
    %17 = vector.shape_cast %16 : vector<128xf32> to vector<1x128xf32>
    %c0_13 = arith.constant 0 : index
    %c0_14 = arith.constant 0 : index
    %18 = memref.load %arg6[%c0_13, %c0_14] : memref<1x1xf32, #tpu.memory_space<smem>>
    %19 = vector.broadcast %18 : f32 to vector<1x128xf32>
    %20 = arith.addf %17, %19 : vector<1x128xf32>
    %c0_15 = arith.constant 0 : index
    %c0_16 = arith.constant 0 : index
    %c0_17 = arith.constant 0 : index
    %21 = vector.load %arg7[%c0_15, %c0_16, %c0_17] : memref<1x1x128xf32, #tpu.memory_space<vmem>>, vector<1x1x128xf32>
    %22 = vector.shape_cast %21 : vector<1x1x128xf32> to vector<1x128xf32>
    %23 = vector.shape_cast %20 : vector<1x128xf32> to vector<1x1x128xf32>
    tpu.vector_store %arg7[%c0_15, %c0_16, %c0_17], %23 {strides = array<i32>} : memref<1x1x128xf32, #tpu.memory_space<vmem>>, vector<1x1x128xf32>,
    return
  }
  func.func @transform_0(%arg0: i32) -> (i32, i32) {
    %c0_i32 = arith.constant 0 : i32
    %c0_i32_0 = arith.constant 0 : i32
    return %c0_i32, %arg0 : i32, i32
  }
  func.func @transform_1(%arg0: i32) -> (i32, i32) {
    %c0_i32 = arith.constant 0 : i32
    %c0_i32_0 = arith.constant 0 : i32
    %c0_i32_1 = arith.constant 0 : i32
    return %c0_i32, %c0_i32_0 : i32, i32
  }
  func.func @transform_2(%arg0: i32) -> (i32, i32) {
    %c0_i32 = arith.constant 0 : i32
    %c0_i32_0 = arith.constant 0 : i32
    %c0_i32_1 = arith.constant 0 : i32
    return %c0_i32, %c0_i32_0 : i32, i32
  }
  func.func @transform_3(%arg0: i32) -> (i32, i32) {
    %c0_i32 = arith.constant 0 : i32
    %c0_i32_0 = arith.constant 0 : i32
    %c0_i32_1 = arith.constant 0 : i32
    return %c0_i32, %c0_i32_0 : i32, i32
  }
  func.func @transform_4(%arg0: i32) -> (i32, i32) {
    %c0_i32 = arith.constant 0 : i32
    %c0_i32_0 = arith.constant 0 : i32
    %c0_i32_1 = arith.constant 0 : i32
    return %c0_i32, %c0_i32_0 : i32, i32
  }
  func.func @transform_5(%arg0: i32) -> (i32, i32) {
    %c0_i32 = arith.constant 0 : i32
    %c0_i32_0 = arith.constant 0 : i32
    %c0_i32_1 = arith.constant 0 : i32
    return %c0_i32, %c0_i32_0 : i32, i32
  }
  func.func @transform_6(%arg0: i32) -> (i32, i32, i32) {
    %c0_i32 = arith.constant 0 : i32
    %c0_i32_0 = arith.constant 0 : i32
    %c0_i32_1 = arith.constant 0 : i32
    return %arg0, %c0_i32, %c0_i32_0 : i32, i32, i32
  }
}

</mosaic_0001>

<llo_original>
// kernel: simple_forward.1
$region0: #{simple_forward.1}
  #allocation0 [shape = 'u32[]', space=smem, size = 0x4, offset = 0x4, fixed_abs, tag = 'smem constant byte address 0x4 - core index']
  #allocation1 [shape = 'u32[144,128]{1,0:T(1,128)}', space=vmem, size = 0x12000, scoped, tag = 'internal scratch']
  #allocation2 [shape = 'f32[1,1]{1,0:T(1,128)S(6)}', space=smem, size = 0x200, scoped, tag = 'scoped memory for simple_forward.1']
  %s0 = inlined_call_operand.vmem [shape: bf16[11,128], index: 0, kind: input, shape index: {}]
  %s1 = inlined_call_operand.vmem [shape: bf16[112,11], index: 1, kind: input, shape index: {}]
  %s2 = inlined_call_operand.vmem [shape: bf16[16,112], index: 2, kind: input, shape index: {}]
  %s3 = inlined_call_operand.vmem [shape: f32[16,1], index: 3, kind: input, shape index: {}]
  %s4 = inlined_call_operand.vmem [shape: f32[16,1], index: 4, kind: input, shape index: {}]
  %s5 = inlined_call_operand.<no memory space> [shape: f32[1,1], index: 5, kind: input, shape index: {}]
  %s6 = inlined_call_operand.vmem [shape: f32[1,1,128], index: 6, kind: output, shape index: {}]
  %s7 = sld [smem:[#allocation0]]
  $region34: #{simple_forward.1} parent=0
    _
  %s9 = ssub.s32 1, %s7
  %s10 = scalar_select 0, %s9, %s7
  %11 = sst [smem:[#allocation2]] %s5
  // Predicated region
  $region2: #{simple_forward.1} parent=0 // pred_check
    _
  $region3: #{simple_forward.1} parent=0 // pred_check_branch
    %13 = sbr.rel (0) target = $region5
  $region4: #{simple_forward.1} parent=0 // pred_region
    _
  $region5: #{simple_forward.1} parent=0 // pred_fallthru
    _
  // Predicated region
  $region6: #{simple_forward.1} parent=0 // pred_check
    _
  $region7: #{simple_forward.1} parent=0 // pred_check_branch
    %15 = sbr.rel (0) target = $region9
  $region8: #{simple_forward.1} parent=0 // pred_region
    _
  $region9: #{simple_forward.1} parent=0 // pred_fallthru
    _
  // Predicated region
  $region10: #{simple_forward.1} parent=0 // pred_check
    _
  $region11: #{simple_forward.1} parent=0 // pred_check_branch
    %17 = sbr.rel (0) target = $region13
  $region12: #{simple_forward.1} parent=0 // pred_region
    _
  $region13: #{simple_forward.1} parent=0 // pred_fallthru
    _
  // Predicated region
  $region14: #{simple_forward.1} parent=0 // pred_check
    _
  $region15: #{simple_forward.1} parent=0 // pred_check_branch
    %19 = sbr.rel (0) target = $region17
  $region16: #{simple_forward.1} parent=0 // pred_region
    _
  $region17: #{simple_forward.1} parent=0 // pred_fallthru
    _
  // Predicated region
  $region18: #{simple_forward.1} parent=0 // pred_check
    _
  $region19: #{simple_forward.1} parent=0 // pred_check_branch
    %21 = sbr.rel (0) target = $region21
  $region20: #{simple_forward.1} parent=0 // pred_region
    _
  $region21: #{simple_forward.1} parent=0 // pred_fallthru
    _
  // Predicated region
  $region22: #{simple_forward.1} parent=0 // pred_check
    _
  $region23: #{simple_forward.1} parent=0 // pred_check_branch
    %23 = sbr.rel (0) target = $region25
  $region24: #{simple_forward.1} parent=0 // pred_region
    _
  $region25: #{simple_forward.1} parent=0 // pred_fallthru
    _
  %v25 = vld [vmem:[%s1] sm:$0xf]
  %v26 = vld [vmem:[%s1 + $0x4] sm:$0xf]
  %v27 = vld [vmem:[%s1 + $0x8] sm:$0xf]
  %v28 = vld [vmem:[%s1 + $0xc] sm:$0xf]
  %v29 = vld [vmem:[%s1 + $0x10] sm:$0xf]
  %v30 = vld [vmem:[%s1 + $0x14] sm:$0xf]
  %v31 = vld [vmem:[%s1 + $0x18] sm:$0xf]
  %v32 = vld [vmem:[%s1 + $0x1c] sm:$0xf]
  %v33 = vld [vmem:[%s1 + $0x20] sm:$0xf]
  %v34 = vld [vmem:[%s1 + $0x24] sm:$0xf]
  %v35 = vld [vmem:[%s1 + $0x28] sm:$0xf]
  %v36 = vld [vmem:[%s1 + $0x2c] sm:$0xf]
  %v37 = vld [vmem:[%s1 + $0x30] sm:$0xf]
  %v38 = vld [vmem:[%s1 + $0x34] sm:$0xf]
  %v39 = vld [vmem:[%s0] sm:$0xf]
  %v40 = vld [vmem:[%s0 + $0x4] sm:$0x3]
  %v55 = vunpack.c.l.b16 %v25
  %v56 = vunpack.c.l.b16 %v26
  %v57 = vunpack.c.l.b16 %v27
  %v58 = vunpack.c.l.b16 %v28
  %v59 = vunpack.c.l.b16 %v29
  %v60 = vunpack.c.l.b16 %v30
  %v61 = vunpack.c.l.b16 %v31
  %v62 = vunpack.c.l.b16 %v32
  %v63 = vunpack.c.l.b16 %v33
  %v64 = vunpack.c.l.b16 %v34
  %v65 = vunpack.c.l.b16 %v35
  %v66 = vunpack.c.l.b16 %v36
  %v67 = vunpack.c.l.b16 %v37
  %v68 = vunpack.c.l.b16 %v38
  %v69 = vpack.c.b16 %v56, %v55
  %v70 = vpack.c.b16 %v58, %v57
  %v71 = vpack.c.b16 %v60, %v59
  %v72 = vpack.c.b16 %v62, %v61
  %v73 = vpack.c.b16 %v64, %v63
  %v74 = vpack.c.b16 %v66, %v65
  %v75 = vpack.c.b16 %v68, %v67
  %v78 = vunpack.c.l.b16 %v39
  %v79 = vunpack.c.l.b16 %v40
  %v80 = vpack.c.b16 %v79, %v78
  %vm81 = vcmask 89088
  %v83 = vsel %vm81, %v69, 0
  %v86 = vsel %vm81, %v70, 0
  %v89 = vsel %vm81, %v71, 0
  %v92 = vsel %vm81, %v72, 0
  %v95 = vsel %vm81, %v73, 0
  %v98 = vsel %vm81, %v74, 0
  %v101 = vsel %vm81, %v75, 0
  %vm103 = vcmask 1044480
  %vm104 = vcmask 1045504
  %v105 = vsel %vm103, 4294967295, 65535
  %v106 = vsel %vm104, %v105, 0
  %v108 = vand.u32 %v80, %v106
  %110 = vmatprep.subr.bf16.mxu0 0
  %111 = vmatpush1.bf16.msra.mxu0 0
  %112 = vmatprep.subr.bf16.mxu0 0
  %113 = vmatpush1.bf16.msra.mxu0 0
  %114 = vmatprep.subr.bf16.mxu0 0
  %115 = vmatpush1.bf16.msra.mxu0 0
  %116 = vmatprep.subr.bf16.mxu0 0
  %117 = vmatpush1.bf16.msra.mxu0 0
  %118 = vmatprep.subr.bf16.mxu0 0
  %119 = vmatpush1.bf16.msra.mxu0 0
  %120 = vmatprep.subr.bf16.mxu0 0
  %121 = vmatpush1.bf16.msra.mxu0 0
  %122 = vmatprep.subr.bf16.mxu0 0
  %123 = vmatpush1.bf16.msra.mxu0 0
  %124 = vmatprep.subr.bf16.mxu0 0
  %125 = vmatpush1.bf16.msra.mxu0 %v108
  %126 = vmatprep.subr.bf16.mxu0 0
  %127 = vmatpush2.bf16.msra.mxu0 0
  %128 = vmatprep.subr.bf16.mxu0 0
  %129 = vmatpush2.bf16.msra.mxu0 0
  %130 = vmatprep.subr.bf16.mxu0 0
  %131 = vmatpush2.bf16.msra.mxu0 0
  %132 = vmatprep.subr.bf16.mxu0 0
  %133 = vmatpush2.bf16.msra.mxu0 0
  %134 = vmatprep.subr.bf16.mxu0 0
  %135 = vmatpush2.bf16.msra.mxu0 0
  %136 = vmatprep.subr.bf16.mxu0 0
  %137 = vmatpush2.bf16.msra.mxu0 0
  %138 = vmatprep.subr.bf16.mxu0 0
  %139 = vmatpush2.bf16.msra.mxu0 0
  %140 = vmatprep.subr.bf16.mxu0 0
  %141 = vmatpush2.bf16.msra.mxu0 0
  %142 = vmatprep.mubr.bf16.mxu0 0
  %143 = vmatmul.mubr.bf16.gmra.mxu0 %v83
  %v144 = vpop.f32.mrf.mxu0
  %v145 = vadd.f32 0.0, %v144
  %v146 = vpop.f32.mrf.mxu0
  %v147 = vpop.f32.mrf.mxu0
  %v148 = vadd.f32 0.0, %v147
  %v149 = vpop.f32.mrf.mxu0
  %150 = vmatprep.mubr.bf16.mxu0 0
  %151 = vmatmul.mubr.bf16.gmra.mxu0 %v86
  %v152 = vpop.f32.mrf.mxu0
  %v153 = vadd.f32 0.0, %v152
  %v154 = vpop.f32.mrf.mxu0
  %v155 = vpop.f32.mrf.mxu0
  %v156 = vadd.f32 0.0, %v155
  %v157 = vpop.f32.mrf.mxu0
  %158 = vmatprep.mubr.bf16.mxu0 0
  %159 = vmatmul.mubr.bf16.gmra.mxu0 %v89
  %v160 = vpop.f32.mrf.mxu0
  %v161 = vadd.f32 0.0, %v160
  %v162 = vpop.f32.mrf.mxu0
  %v163 = vpop.f32.mrf.mxu0
  %v164 = vadd.f32 0.0, %v163
  %v165 = vpop.f32.mrf.mxu0
  %166 = vmatprep.mubr.bf16.mxu0 0
  %167 = vmatmul.mubr.bf16.gmra.mxu0 %v92
  %v168 = vpop.f32.mrf.mxu0
  %v169 = vadd.f32 0.0, %v168
  %v170 = vpop.f32.mrf.mxu0
  %v171 = vpop.f32.mrf.mxu0
  %v172 = vadd.f32 0.0, %v171
  %v173 = vpop.f32.mrf.mxu0
  %174 = vmatprep.mubr.bf16.mxu0 0
  %175 = vmatmul.mubr.bf16.gmra.mxu0 %v95
  %v176 = vpop.f32.mrf.mxu0
  %v177 = vadd.f32 0.0, %v176
  %v178 = vpop.f32.mrf.mxu0
  %v179 = vpop.f32.mrf.mxu0
  %v180 = vadd.f32 0.0, %v179
  %v181 = vpop.f32.mrf.mxu0
  %182 = vmatprep.mubr.bf16.mxu0 0
  %183 = vmatmul.mubr.bf16.gmra.mxu0 %v98
  %v184 = vpop.f32.mrf.mxu0
  %v185 = vadd.f32 0.0, %v184
  %v186 = vpop.f32.mrf.mxu0
  %v187 = vpop.f32.mrf.mxu0
  %v188 = vadd.f32 0.0, %v187
  %v189 = vpop.f32.mrf.mxu0
  %190 = vmatprep.mubr.bf16.mxu0 0
  %191 = vmatmul.mubr.bf16.gmra.mxu0 %v101
  %v192 = vpop.f32.mrf.mxu0
  %v193 = vadd.f32 0.0, %v192
  %v194 = vpop.f32.mrf.mxu0
  %v195 = vpop.f32.mrf.mxu0
  %v196 = vadd.f32 0.0, %v195
  %v197 = vpop.f32.mrf.mxu0
  %198 = vdwg.mxu0
  %v199 = vmax.f32 %v145, 0.0
  %v200 = vmax.f32 %v148, 0.0
  %v201 = vmax.f32 %v153, 0.0
  %v202 = vmax.f32 %v156, 0.0
  %v203 = vmax.f32 %v161, 0.0
  %v204 = vmax.f32 %v164, 0.0
  %v205 = vmax.f32 %v169, 0.0
  %v206 = vmax.f32 %v172, 0.0
  %v207 = vmax.f32 %v177, 0.0
  %v208 = vmax.f32 %v180, 0.0
  %v209 = vmax.f32 %v185, 0.0
  %v210 = vmax.f32 %v188, 0.0
  %v211 = vmax.f32 %v193, 0.0
  %v212 = vmax.f32 %v196, 0.0
  %v213 = vpack.c.bf16 %v200, %v199
  %v214 = vpack.c.bf16 %v202, %v201
  %v215 = vpack.c.bf16 %v204, %v203
  %v216 = vpack.c.bf16 %v206, %v205
  %v217 = vpack.c.bf16 %v208, %v207
  %v218 = vpack.c.bf16 %v210, %v209
  %v219 = vpack.c.bf16 %v212, %v211
  %v220 = vld [vmem:[%s2] sm:$0xf]
  %v221 = vld [vmem:[%s2 + $0x4] sm:$0xf]
  %v222 = vld [vmem:[%s3] sm:$0xff]
  %v223 = vld [vmem:[%s3 + $0x8] sm:$0xff]
  %225 = vset.pattern.permute.xlu0 0
  %226 = vperm.xlu0 %225, %v222
  %v227 = vpop.permute.xlu0 %226
  %230 = vset.pattern.permute.xlu0 0
  %231 = vperm.xlu0 %230, %v223
  %v232 = vpop.permute.xlu0 %231
  %v236 = vunpack.c.l.b16 %v220
  %v237 = vunpack.c.l.b16 %v221
  %v238 = vpack.c.b16 %v237, %v236
  %vm239 = vcmask 916480
  %v241 = vsel %vm239, %v238, 0
  %243 = vmatprep.subr.bf16.mxu0 0
  %244 = vmatpush1.bf16.msra.mxu0 0
  %245 = vmatprep.subr.bf16.mxu0 0
  %246 = vmatpush1.bf16.msra.mxu0 %v219
  %247 = vmatprep.subr.bf16.mxu0 0
  %248 = vmatpush1.bf16.msra.mxu0 %v218
  %249 = vmatprep.subr.bf16.mxu0 0
  %250 = vmatpush1.bf16.msra.mxu0 %v217
  %251 = vmatprep.subr.bf16.mxu0 0
  %252 = vmatpush1.bf16.msra.mxu0 %v216
  %253 = vmatprep.subr.bf16.mxu0 0
  %254 = vmatpush1.bf16.msra.mxu0 %v215
  %255 = vmatprep.subr.bf16.mxu0 0
  %256 = vmatpush1.bf16.msra.mxu0 %v214
  %257 = vmatprep.subr.bf16.mxu0 0
  %258 = vmatpush1.bf16.msra.mxu0 %v213
  %259 = vmatprep.subr.bf16.mxu0 0
  %260 = vmatpush2.bf16.msra.mxu0 0
  %261 = vmatprep.subr.bf16.mxu0 0
  %262 = vmatpush2.bf16.msra.mxu0 0
  %263 = vmatprep.subr.bf16.mxu0 0
  %264 = vmatpush2.bf16.msra.mxu0 0
  %265 = vmatprep.subr.bf16.mxu0 0
  %266 = vmatpush2.bf16.msra.mxu0 0
  %267 = vmatprep.subr.bf16.mxu0 0
  %268 = vmatpush2.bf16.msra.mxu0 0
  %269 = vmatprep.subr.bf16.mxu0 0
  %270 = vmatpush2.bf16.msra.mxu0 0
  %271 = vmatprep.subr.bf16.mxu0 0
  %272 = vmatpush2.bf16.msra.mxu0 0
  %273 = vmatprep.subr.bf16.mxu0 0
  %274 = vmatpush2.bf16.msra.mxu0 0
  %275 = vmatprep.mubr.bf16.mxu0 0
  %276 = vmatmul.mubr.bf16.gmra.mxu0 %v241
  %v277 = vpop.f32.mrf.mxu0
  %v278 = vadd.f32 %v227, %v277
  %v279 = vpop.f32.mrf.mxu0
  %v280 = vpop.f32.mrf.mxu0
  %v281 = vadd.f32 %v232, %v280
  %v282 = vpop.f32.mrf.mxu0
  %283 = vdwg.mxu0
  %v284 = vmax.f32 %v278, 0.0
  %v285 = vmax.f32 %v281, 0.0
  %v286 = vld [vmem:[%s4] sm:$0xff]
  %v287 = vld [vmem:[%s4 + $0x8] sm:$0xff]
  %289 = vset.pattern.permute.xlu0 0
  %290 = vperm.xlu0 %289, %v286
  %v291 = vpop.permute.xlu0 %290
  %294 = vset.pattern.permute.xlu0 0
  %295 = vperm.xlu0 %294, %v287
  %v296 = vpop.permute.xlu0 %295
  %v298 = vmul.f32 %v284, %v291
  %v299 = vmul.f32 %v285, %v296
  %v300 = vadd.f32 %v298, %v299
  %v301 = vrot.slane %v300, 4
  %v302 = vadd.f32 %v300, %v301
  %v303 = vrot.slane %v302, 2
  %v304 = vadd.f32 %v302, %v303
  %v305 = vrot.slane %v304, 1
  %v306 = vadd.f32 %v304, %v305
  %s307 = sld [smem:[#allocation2]]
  %v308 = vstv %s307
  %v309 = vadd.f32 %v306, %v308
  %310 = vst [vmem:[%s6] sm:$0x1] %v309
  // Predicated region
  $region26: #{simple_forward.1} parent=0 // pred_check
    _
  $region27: #{simple_forward.1} parent=0 // pred_check_branch
    %312 = sbr.rel (0) target = $region29
  $region28: #{simple_forward.1} parent=0 // pred_region
    _
  $region29: #{simple_forward.1} parent=0 // pred_fallthru
    _
  // Predicated region
  $region30: #{simple_forward.1} parent=0 // pred_check
    _
  $region31: #{simple_forward.1} parent=0 // pred_check_branch
    %314 = sbr.rel (0) target = $region33
  $region32: #{simple_forward.1} parent=0 // pred_region
    _
  $region33: #{simple_forward.1} parent=0 // pred_fallthru
    _

</llo_original>
